<compile_context>
chip_gen: v7x
topology: tpu7x:2x2x1
jax: 0.10.0
libtpu: 0.0.40
codegen_flags: <defaults>
</compile_context>

<pallas_src>
import jax
import jax.numpy as jnp
from jax.experimental import pallas as pl
from jax.experimental.pallas import tpu as pltpu


def _round_up(n, m):
    return ((n + m - 1) // m) * m


def _make_critic_kernel(pack, Ds, Da):
    """Build the kernel; packed-parameter row offsets are static (closed over)."""
    K1s = pack * Ds           # rows of replicated l1 state-weight block
    K1a = pack * Da           # rows of replicated l1 action-weight block
    H = 2 * pack              # packed hidden width (2 features x `pack` batch rows)
    o_w1a = K1s
    o_w2 = o_w1a + K1a
    o_w3 = o_w2 + H
    o_b = o_w3 + H            # 8-row bias block starts here (all offsets 8-aligned)

    def kernel(xs_ref, xa_ref, wp_ref, q_ref):
        # xs_ref: (TR, pack*Ds)  -- `pack` batch rows packed along lanes
        # xa_ref: (TR, pack*Da)
        # wp_ref: (o_b + 8, H)   -- single packed parameter slab
        # q_ref : (TR, pack)
        xs = xs_ref[...]
        xa = xa_ref[...]
        w1s = wp_ref[0:K1s, :]                    # kron(I_pack, l1_w_state.T)
        w1a = wp_ref[o_w1a:o_w1a + K1a, :]        # kron(I_pack, l1_w_action.T)
        w2 = wp_ref[o_w2:o_w2 + H, :]             # kron(I_pack, l2_w.T)
        w3 = wp_ref[o_w3:o_w3 + H, :]             # kron(I_pack, l3_w.T), right half zero
        bias = wp_ref[o_b:o_b + 8, :]             # rows 0/1/2 = b1/b2/b3 (replicated)
        b1 = bias[0:1, :]
        b2 = bias[1:2, :]
        b3 = bias[2:3, :]

        # Layer 1: split-K over (state | action) -> fused torch.cat, no transpose.
        h1 = jnp.dot(xs, w1s, preferred_element_type=jnp.float32)
        h1 = h1 + jnp.dot(xa, w1a, preferred_element_type=jnp.float32)
        h1 = jnp.maximum(h1 + b1, 0.0)                                   # (TR, H)
        # Layer 2 (block-diagonal replicated 2x2).
        h2 = jnp.maximum(
            jnp.dot(h1, w2, preferred_element_type=jnp.float32) + b2, 0.0)  # (TR, H)
        # Layer 3 (block-diagonal replicated 2x1); useful output in lanes [0, pack).
        q = jnp.dot(h2, w3, preferred_element_type=jnp.float32) + b3
        q_ref[...] = q[:, 0:pack].astype(q_ref.dtype)

    return kernel


def _pack_params(params, pack):
    """Pack all weights/biases into one block-diagonal parameter slab.

    Each nn.Linear weight w [out, in] is replicated as kron(I_pack, w.T) so the
    whole MLP evaluates directly on the row-packed (pack batch rows per kernel
    row) activation layout; biases are lane-tiled to match.
    """
    w1s = params["w1_s"].astype(jnp.float32)          # (2, Ds)
    w1a = params["w1_a"].astype(jnp.float32)          # (2, Da)
    w2 = params["w2"].astype(jnp.float32)             # (2, 2)
    w3 = params["w3"].astype(jnp.float32)             # (1, 2)
    b1 = params["b1"].reshape(-1).astype(jnp.float32)  # (2,)
    b2 = params["b2"].reshape(-1).astype(jnp.float32)  # (2,)
    b3 = params["b3"].reshape(-1).astype(jnp.float32)  # (1,)

    H = 2 * pack
    eye = jnp.eye(pack, dtype=jnp.float32)
    W1s = jnp.kron(eye, w1s.T)                                        # (pack*Ds, H)
    W1a = jnp.kron(eye, w1a.T)                                        # (pack*Da, H)
    W2 = jnp.kron(eye, w2.T)                                          # (H, H)
    W3 = jnp.concatenate(
        [jnp.kron(eye, w3.T), jnp.zeros((H, H - pack), jnp.float32)], axis=1)  # (H, H)
    bias = jnp.zeros((8, H), jnp.float32)
    bias = bias.at[0, :].set(jnp.tile(b1, pack))
    bias = bias.at[1, :].set(jnp.tile(b2, pack))
    bias = bias.at[2, 0:pack].set(jnp.tile(b3, pack))
    return jnp.concatenate([W1s, W1a, W2, W3, bias], axis=0)          # (.., H)


def critic_forward(state, action, params, *, pack=8, rows_per_tile_max=32768,
                   core_parallel=False):
    """Pallas implementation of Critic.forward. Returns (q[B,1], max_logvar)."""
    B, Ds = state.shape
    Ba, Da = action.shape
    assert Ba == B
    assert pack % 8 == 0

    # ---- Pack `pack` batch rows per kernel row (free row-major bitcast reshape). ----
    Bp = _round_up(B, pack)
    if Bp != B:
        # Only hit for ragged batch sizes; costs one copy of the (small) tail-padded input.
        state = jnp.pad(state, ((0, Bp - B), (0, 0)))
        action = jnp.pad(action, ((0, Bp - B), (0, 0)))
    R = Bp // pack
    xs = state.reshape(R, pack * Ds)
    xa = action.reshape(R, pack * Da)

    wp = _pack_params(params, pack)                 # tiny (~170 x 16) slab, one DMA
    kernel = _make_critic_kernel(pack, Ds, Da)

    # ---- Tile packed rows; TR is sublane-aligned (multiple of 8) and never exceeds R. ----
    tr_max = max(8, (rows_per_tile_max // pack) // 8 * 8)
    if R < 8:
        TR = R                                      # single tile == full array (allowed)
    else:
        TR = min(tr_max, (R // 8) * 8)
    num_tiles = pl.cdiv(R, TR)
    Rp = num_tiles * TR                             # out padded to whole tiles -> no OOB writes
    # NOTE: the ragged last tile reads past the end of xs/xa; Pallas pads those reads
    # and the corresponding output rows (>= R) are sliced off below, so this is benign.

    sem = pltpu.CORE_PARALLEL if core_parallel else pltpu.PARALLEL
    flops = 2 * B * (2 * (Ds + Da) + 4 + 2) + 5 * B
    bytes_accessed = 4 * B * (Ds + Da + 1)

    qp = pl.pallas_call(
        kernel,
        grid=(num_tiles,),
        out_shape=jax.ShapeDtypeStruct((Rp, pack), jnp.float32),
        in_specs=[
            pl.BlockSpec((TR, pack * Ds), lambda i: (i, 0)),   # packed state tile
            pl.BlockSpec((TR, pack * Da), lambda i: (i, 0)),   # packed action tile
            pl.BlockSpec(wp.shape, lambda i: (0, 0)),          # single packed param slab
        ],
        out_specs=pl.BlockSpec((TR, pack), lambda i: (i, 0)),
        compiler_params=pltpu.CompilerParams(
            dimension_semantics=(sem,),
            vmem_limit_bytes=32 * 1024 * 1024,      # safe on v5e/v6e/v7x for the default tile
        ),
        cost_estimate=pl.CostEstimate(
            flops=flops, bytes_accessed=bytes_accessed, transcendentals=0),
    )(xs, xa, wp)

    q = qp[:R].reshape(Bp)[:B].reshape(B, 1)        # free layout plumbing (tiny output)
    # max_logvar is a returned parameter (no compute) -> pass through.
    return q, params["max_logvar"]


def init_params(key, state_dim, action_dim):
    """Deterministic synthetic init matching the PyTorch module's shapes.

    Weights stay in nn.Linear layout [out_features, in_features]; l1.weight is
    pre-split into its state / action column blocks (split-K fused concat).
    """
    d_in = state_dim + action_dim
    k1, k2, k3, k4, k5, k6 = jax.random.split(key, 6)
    w1 = jax.random.normal(k1, (2, d_in), jnp.float32) * 0.1
    return {
        "w1_s": w1[:, :state_dim],
        "w1_a": w1[:, state_dim:],
        "b1": jax.random.normal(k2, (2,), jnp.float32) * 0.1,
        "w2": jax.random.normal(k3, (2, 2), jnp.float32) * 0.1,
        "b2": jax.random.normal(k4, (2,), jnp.float32) * 0.1,
        "w3": jax.random.normal(k5, (1, 2), jnp.float32) * 0.1,
        "b3": jax.random.normal(k6, (1,), jnp.float32) * 0.1,
        # nn.Parameter(torch.ones((1, state_dim)) / 2)
        "max_logvar": jnp.ones((1, state_dim), jnp.float32) / 2.0,
    }


def _reference_forward(state, action, params):
    x = jnp.concatenate([state, action], axis=1)
    w1 = jnp.concatenate([params["w1_s"], params["w1_a"]], axis=1)   # (2, D) [out, in]
    h1 = jnp.maximum(x @ w1.T + params["b1"][None, :], 0.0)
    h2 = jnp.maximum(h1 @ params["w2"].T + params["b2"][None, :], 0.0)
    q = h2 @ params["w3"].T + params["b3"][None, :]
    return q, params["max_logvar"]


if __name__ == "__main__":
    state_dim, action_dim, batch = 12, 4, 8
    key = jax.random.PRNGKey(0)
    kp, ks, ka = jax.random.split(key, 3)

    params = init_params(kp, state_dim, action_dim)
    state = jax.random.normal(ks, (batch, state_dim), jnp.float32)
    action = jax.random.normal(ka, (batch, action_dim), jnp.float32)

    # Small-batch path (single tile, B a multiple of pack -> no input copy).
    q, max_logvar = critic_forward(state, action, params)
    q = jax.block_until_ready(q)
    max_logvar = jax.block_until_ready(max_logvar)

    q_ref, ml_ref = _reference_forward(state, action, params)
    assert q.shape == (batch, 1)
    assert max_logvar.shape == (1, state_dim)
    assert jnp.allclose(q, q_ref, atol=1e-5, rtol=1e-5)
    assert jnp.allclose(max_logvar, ml_ref)

    # Multi-tile + ragged-batch path (4 grid steps, padded tail) to exercise the pipeline.
    b2 = 200
    ks2, ka2 = jax.random.split(jax.random.PRNGKey(1), 2)
    state2 = jax.random.normal(ks2, (b2, state_dim), jnp.float32)
    action2 = jax.random.normal(ka2, (b2, action_dim), jnp.float32)
    q2, _ = critic_forward(state2, action2, params, rows_per_tile_max=64)
    q2 = jax.block_until_ready(q2)
    q2_ref, _ = _reference_forward(state2, action2, params)
    assert q2.shape == (b2, 1)
    assert jnp.allclose(q2, q2_ref, atol=1e-5, rtol=1e-5)

    print("KERNEL_OK")
</pallas_src>

<mosaic_0001>
module attributes {stable_mosaic.version = 11 : i64} {
  func.func @kernel(%arg0: i32, %arg1: memref<1x96xf32, #tpu.memory_space<vmem>>, %arg2: memref<1x32xf32, #tpu.memory_space<vmem>>, %arg3: memref<168x16xf32, #tpu.memory_space<vmem>>, %arg4: memref<1x8xf32, #tpu.memory_space<vmem>>) attributes {dimension_semantics = [#tpu.dimension_semantics<parallel>], iteration_bounds = array<i64: 1>, scalar_prefetch = 0 : i64, scratch_operands = 0 : i64, tpu.core_type = #tpu.core_type<tc>, window_params = [{transform_indices = @transform_0, window_bounds = array<i64: 1, 96>}, {transform_indices = @transform_1, window_bounds = array<i64: 1, 32>}, {pipeline_mode = #tpu.pipeline_mode<synchronous>, transform_indices = @transform_2, window_bounds = array<i64: 168, 16>}, {transform_indices = @transform_3, window_bounds = array<i64: 1, 8>}]} {
    %c0 = arith.constant 0 : index
    %c0_0 = arith.constant 0 : index
    %0 = vector.load %arg1[%c0, %c0_0] : memref<1x96xf32, #tpu.memory_space<vmem>>, vector<1x96xf32>
    %c0_1 = arith.constant 0 : index
    %c0_2 = arith.constant 0 : index
    %1 = vector.load %arg2[%c0_1, %c0_2] : memref<1x32xf32, #tpu.memory_space<vmem>>, vector<1x32xf32>
    %c0_3 = arith.constant 0 : index
    %c0_4 = arith.constant 0 : index
    %2 = vector.load %arg3[%c0_3, %c0_4] : memref<168x16xf32, #tpu.memory_space<vmem>>, vector<96x16xf32>
    %c96 = arith.constant 96 : index
    %c0_5 = arith.constant 0 : index
    %3 = vector.load %arg3[%c96, %c0_5] : memref<168x16xf32, #tpu.memory_space<vmem>>, vector<32x16xf32>
    %c128 = arith.constant 128 : index
    %c0_6 = arith.constant 0 : index
    %4 = vector.load %arg3[%c128, %c0_6] : memref<168x16xf32, #tpu.memory_space<vmem>>, vector<16x16xf32>
    %c144 = arith.constant 144 : index
    %c0_7 = arith.constant 0 : index
    %5 = vector.load %arg3[%c144, %c0_7] : memref<168x16xf32, #tpu.memory_space<vmem>>, vector<16x16xf32>
    %c160 = arith.constant 160 : index
    %c0_8 = arith.constant 0 : index
    %6 = vector.load %arg3[%c160, %c0_8] : memref<168x16xf32, #tpu.memory_space<vmem>>, vector<8x16xf32>
    %7 = vector.extract_strided_slice %6 {offsets = [0, 0], sizes = [1, 16], strides = [1, 1]} : vector<8x16xf32> to vector<1x16xf32>
    %8 = vector.extract_strided_slice %6 {offsets = [1, 0], sizes = [1, 16], strides = [1, 1]} : vector<8x16xf32> to vector<1x16xf32>
    %9 = vector.extract_strided_slice %6 {offsets = [2, 0], sizes = [1, 16], strides = [1, 1]} : vector<8x16xf32> to vector<1x16xf32>
    %cst = arith.constant dense<0.000000e+00> : vector<1x16xf32>
    %10 = tpu.matmul %0, %2, %cst {dimension_numbers = #tpu.dot_dimension_numbers<[1], [0], [0], [1], [0, 0, 1, 1], [], []>} : vector<1x96xf32>, vector<96x16xf32>, vector<1x16xf32> -> vector<1x16xf32>
    %cst_9 = arith.constant dense<0.000000e+00> : vector<1x16xf32>
    %11 = tpu.matmul %1, %3, %cst_9 {dimension_numbers = #tpu.dot_dimension_numbers<[1], [0], [0], [1], [0, 0, 1, 1], [], []>} : vector<1x32xf32>, vector<32x16xf32>, vector<1x16xf32> -> vector<1x16xf32>
    %12 = arith.addf %10, %11 : vector<1x16xf32>
    %13 = arith.addf %12, %7 : vector<1x16xf32>
    %cst_10 = arith.constant 0.000000e+00 : f32
    %14 = vector.broadcast %cst_10 : f32 to vector<1x16xf32>
    %15 = arith.maximumf %13, %14 : vector<1x16xf32>
    %cst_11 = arith.constant dense<0.000000e+00> : vector<1x16xf32>
    %16 = tpu.matmul %15, %4, %cst_11 {dimension_numbers = #tpu.dot_dimension_numbers<[1], [0], [0], [1], [0, 0, 1, 1], [], []>} : vector<1x16xf32>, vector<16x16xf32>, vector<1x16xf32> -> vector<1x16xf32>
    %17 = arith.addf %16, %8 : vector<1x16xf32>
    %cst_12 = arith.constant 0.000000e+00 : f32
    %18 = vector.broadcast %cst_12 : f32 to vector<1x16xf32>
    %19 = arith.maximumf %17, %18 : vector<1x16xf32>
    %cst_13 = arith.constant dense<0.000000e+00> : vector<1x16xf32>
    %20 = tpu.matmul %19, %5, %cst_13 {dimension_numbers = #tpu.dot_dimension_numbers<[1], [0], [0], [1], [0, 0, 1, 1], [], []>} : vector<1x16xf32>, vector<16x16xf32>, vector<1x16xf32> -> vector<1x16xf32>
    %21 = arith.addf %20, %9 : vector<1x16xf32>
    %22 = vector.extract_strided_slice %21 {offsets = [0, 0], sizes = [1, 8], strides = [1, 1]} : vector<1x16xf32> to vector<1x8xf32>
    %c0_14 = arith.constant 0 : index
    %c0_15 = arith.constant 0 : index
    %23 = vector.load %arg4[%c0_14, %c0_15] : memref<1x8xf32, #tpu.memory_space<vmem>>, vector<1x8xf32>
    tpu.vector_store %arg4[%c0_14, %c0_15], %22 {strides = array<i32>} : memref<1x8xf32, #tpu.memory_space<vmem>>, vector<1x8xf32>,
    return
  }
  func.func @transform_0(%arg0: i32) -> (i32, i32) {
    %c0_i32 = arith.constant 0 : i32
    %c0_i32_0 = arith.constant 0 : i32
    return %arg0, %c0_i32 : i32, i32
  }
  func.func @transform_1(%arg0: i32) -> (i32, i32) {
    %c0_i32 = arith.constant 0 : i32
    %c0_i32_0 = arith.constant 0 : i32
    return %arg0, %c0_i32 : i32, i32
  }
  func.func @transform_2(%arg0: i32) -> (i32, i32) {
    %c0_i32 = arith.constant 0 : i32
    %c0_i32_0 = arith.constant 0 : i32
    %c0_i32_1 = arith.constant 0 : i32
    return %c0_i32, %c0_i32_0 : i32, i32
  }
  func.func @transform_3(%arg0: i32) -> (i32, i32) {
    %c0_i32 = arith.constant 0 : i32
    %c0_i32_0 = arith.constant 0 : i32
    return %arg0, %c0_i32 : i32, i32
  }
}

</mosaic_0001>

<llo_original>
// kernel: tpu_custom_call.1
$region0: #{tpu_custom_call.1}
  #allocation0 [shape = 'u32[]', space=smem, size = 0x4, offset = 0x4, fixed_abs, tag = 'smem constant byte address 0x4 - core index']
  #allocation1 [shape = 'u32[144,128]{1,0:T(1,128)}', space=vmem, size = 0x12000, scoped, tag = 'internal scratch']
  %s0 = inlined_call_operand.vmem [shape: f32[1,96], index: 0, kind: input, shape index: {}]
  %s1 = inlined_call_operand.vmem [shape: f32[1,32], index: 1, kind: input, shape index: {}]
  %s2 = inlined_call_operand.vmem [shape: f32[168,16], index: 2, kind: input, shape index: {}]
  %s3 = inlined_call_operand.hbm [shape: f32[1,8], index: 3, kind: output, shape index: {}]
  %s4 = sld [smem:[#allocation0]]
  $region22: #{tpu_custom_call.1} parent=0
    _
  %s6 = ssub.s32 1, %s4
  %s7 = scalar_select 0, %s6, %s4
  $region1: #{tpu_custom_call.1} parent=0
    #allocation2 [shape = 'u8[512]{0}', space=vmem, size = 0x400, scoped, tag = 'output window, operand 0, single buffered']
    #allocation3 [shape = 's32[1]{0}', space=sflag, size = 0x4, scoped, tag = 'scoped memory for tpu_custom_call.1']
    %8 = vsyncpa [#allocation3], 0
    // Predicated region
    $region2: #{tpu_custom_call.1} parent=1 // pred_check
      _
    $region3: #{tpu_custom_call.1} parent=1 // pred_check_branch
      %10 = sbr.rel (0) target = $region5
    $region4: #{tpu_custom_call.1} parent=1 // pred_region
      _
    $region5: #{tpu_custom_call.1} parent=1 // pred_fallthru
      _
    // Predicated region
    $region6: #{tpu_custom_call.1} parent=1 // pred_check
      _
    $region7: #{tpu_custom_call.1} parent=1 // pred_check_branch
      %12 = sbr.rel (0) target = $region9
    $region8: #{tpu_custom_call.1} parent=1 // pred_region
      _
    $region9: #{tpu_custom_call.1} parent=1 // pred_fallthru
      _
    // Predicated region
    $region10: #{tpu_custom_call.1} parent=1 // pred_check
      _
    $region11: #{tpu_custom_call.1} parent=1 // pred_check_branch
      %14 = sbr.rel (0) target = $region13
    $region12: #{tpu_custom_call.1} parent=1 // pred_region
      _
    $region13: #{tpu_custom_call.1} parent=1 // pred_fallthru
      _
    %v15 = vld [vmem:[%s0] sm:$0x1]
    %v16 = vld [vmem:[%s1] sm:$0x1]
    %v17 = vld [vmem:[%s2] sm:$0xff]
    %v18 = vld [vmem:[%s2 + $0x8] sm:$0xff]
    %v19 = vld [vmem:[%s2 + $0x10] sm:$0xff]
    %v20 = vld [vmem:[%s2 + $0x18] sm:$0xff]
    %v21 = vld [vmem:[%s2 + $0x20] sm:$0xff]
    %v22 = vld [vmem:[%s2 + $0x28] sm:$0xff]
    %v23 = vld [vmem:[%s2 + $0x30] sm:$0xff]
    %v24 = vld [vmem:[%s2 + $0x38] sm:$0xff]
    %v25 = vld [vmem:[%s2 + $0x40] sm:$0xff]
    %v26 = vld [vmem:[%s2 + $0x48] sm:$0xff]
    %v27 = vld [vmem:[%s2 + $0x50] sm:$0xff]
    %v28 = vld [vmem:[%s2 + $0x58] sm:$0xff]
    %v29 = vld [vmem:[%s2 + $0x60] sm:$0xff]
    %v30 = vld [vmem:[%s2 + $0x68] sm:$0xff]
    %v31 = vld [vmem:[%s2 + $0x70] sm:$0xff]
    %v32 = vld [vmem:[%s2 + $0x78] sm:$0xff]
    %v33 = vld [vmem:[%s2 + $0x80] sm:$0xff]
    %v34 = vld [vmem:[%s2 + $0x88] sm:$0xff]
    %v35 = vld [vmem:[%s2 + $0x90] sm:$0xff]
    %v36 = vld [vmem:[%s2 + $0x98] sm:$0xff]
    %v37 = vld [vmem:[%s2 + $0xa0] sm:$0xff]
    %vm38 = vcmask 261120
    %v40 = vsel %vm38, %v16, 0
    %42 = vmatprep.subr.mxu0 0.0
    %43 = vmatpush1.msra.mxu0 %v29
    %44 = vmatprep.subr.mxu0 0.0
    %45 = vmatpush1.msra.mxu0 %v30
    %46 = vmatprep.subr.mxu0 0.0
    %47 = vmatpush1.msra.mxu0 %v31
    %48 = vmatprep.subr.mxu0 0.0
    %49 = vmatpush1.msra.mxu0 %v32
    %50 = vmatprep.subr.mxu0 0.0
    %51 = vmatpush1.msra.mxu0 0.0
    %52 = vmatprep.subr.mxu0 0.0
    %53 = vmatpush1.msra.mxu0 0.0
    %54 = vmatprep.subr.mxu0 0.0
    %55 = vmatpush1.msra.mxu0 0.0
    %56 = vmatprep.subr.mxu0 0.0
    %57 = vmatpush1.msra.mxu0 0.0
    %58 = vmatprep.subr.mxu0 0.0
    %59 = vmatpush1.msra.mxu0 0.0
    %60 = vmatprep.subr.mxu0 0.0
    %61 = vmatpush1.msra.mxu0 0.0
    %62 = vmatprep.subr.mxu0 0.0
    %63 = vmatpush1.msra.mxu0 0.0
    %64 = vmatprep.subr.mxu0 0.0
    %65 = vmatpush1.msra.mxu0 0.0
    %66 = vmatprep.subr.mxu0 0.0
    %67 = vmatpush1.msra.mxu0 0.0
    %68 = vmatprep.subr.mxu0 0.0
    %69 = vmatpush1.msra.mxu0 0.0
    %70 = vmatprep.subr.mxu0 0.0
    %71 = vmatpush1.msra.mxu0 0.0
    %72 = vmatprep.subr.mxu0 0.0
    %73 = vmatpush1.msra.mxu0 0.0
    %74 = vmatprep.subr.mxu0 0.0
    %75 = vmatpush1.msra.mxu0 0.0
    %76 = vmatprep.subr.mxu0 0.0
    %77 = vmatpush1.msra.mxu0 0.0
    %78 = vmatprep.subr.mxu0 0.0
    %79 = vmatpush1.msra.mxu0 0.0
    %80 = vmatprep.subr.mxu0 0.0
    %81 = vmatpush1.msra.mxu0 0.0
    %82 = vmatprep.subr.mxu0 0.0
    %83 = vmatpush1.msra.mxu0 0.0
    %84 = vmatprep.subr.mxu0 0.0
    %85 = vmatpush1.msra.mxu0 0.0
    %86 = vmatprep.subr.mxu0 0.0
    %87 = vmatpush1.msra.mxu0 0.0
    %88 = vmatprep.subr.mxu0 0.0
    %89 = vmatpush1.msra.mxu0 0.0
    %90 = vmatprep.subr.mxu0 0.0
    %91 = vmatpush1.msra.mxu0 0.0
    %92 = vmatprep.subr.mxu0 0.0
    %93 = vmatpush1.msra.mxu0 0.0
    %94 = vmatprep.subr.mxu0 0.0
    %95 = vmatpush1.msra.mxu0 0.0
    %96 = vmatprep.subr.mxu0 0.0
    %97 = vmatpush1.msra.mxu0 0.0
    %98 = vmatprep.subr.mxu0 0.0
    %99 = vmatpush1.msra.mxu0 0.0
    %100 = vmatprep.subr.mxu0 0.0
    %101 = vmatpush1.msra.mxu0 0.0
    %102 = vmatprep.subr.mxu0 0.0
    %103 = vmatpush1.msra.mxu0 0.0
    %104 = vmatprep.subr.mxu0 0.0
    %105 = vmatpush1.msra.mxu0 0.0
    %106 = vmatprep.mubr.f32.mxu0 0.0
    %107 = vmatmul.mubr.f32.gmra.mrb[0].mxu0 %v40
    %v108 = vpop.f32.mrb[0].mxu0
    %v109 = vadd.f32 0.0, %v108
    %v110 = vpop.f32.mrb[0].mxu0
    %111 = vdwg.mxu0
    %vm112 = vcmask 785408
    %v114 = vsel %vm112, %v15, 0
    %116 = vmatprep.subr.mxu0 0.0
    %117 = vmatpush1.msra.mxu0 %v17
    %118 = vmatprep.subr.mxu0 0.0
    %119 = vmatpush1.msra.mxu0 %v18
    %120 = vmatprep.subr.mxu0 0.0
    %121 = vmatpush1.msra.mxu0 %v19
    %122 = vmatprep.subr.mxu0 0.0
    %123 = vmatpush1.msra.mxu0 %v20
    %124 = vmatprep.subr.mxu0 0.0
    %125 = vmatpush1.msra.mxu0 %v21
    %126 = vmatprep.subr.mxu0 0.0
    %127 = vmatpush1.msra.mxu0 %v22
    %128 = vmatprep.subr.mxu0 0.0
    %129 = vmatpush1.msra.mxu0 %v23
    %130 = vmatprep.subr.mxu0 0.0
    %131 = vmatpush1.msra.mxu0 %v24
    %132 = vmatprep.subr.mxu0 0.0
    %133 = vmatpush1.msra.mxu0 %v25
    %134 = vmatprep.subr.mxu0 0.0
    %135 = vmatpush1.msra.mxu0 %v26
    %136 = vmatprep.subr.mxu0 0.0
    %137 = vmatpush1.msra.mxu0 %v27
    %138 = vmatprep.subr.mxu0 0.0
    %139 = vmatpush1.msra.mxu0 %v28
    %140 = vmatprep.subr.mxu0 0.0
    %141 = vmatpush1.msra.mxu0 0.0
    %142 = vmatprep.subr.mxu0 0.0
    %143 = vmatpush1.msra.mxu0 0.0
    %144 = vmatprep.subr.mxu0 0.0
    %145 = vmatpush1.msra.mxu0 0.0
    %146 = vmatprep.subr.mxu0 0.0
    %147 = vmatpush1.msra.mxu0 0.0
    %148 = vmatprep.subr.mxu0 0.0
    %149 = vmatpush1.msra.mxu0 0.0
    %150 = vmatprep.subr.mxu0 0.0
    %151 = vmatpush1.msra.mxu0 0.0
    %152 = vmatprep.subr.mxu0 0.0
    %153 = vmatpush1.msra.mxu0 0.0
    %154 = vmatprep.subr.mxu0 0.0
    %155 = vmatpush1.msra.mxu0 0.0
    %156 = vmatprep.subr.mxu0 0.0
    %157 = vmatpush1.msra.mxu0 0.0
    %158 = vmatprep.subr.mxu0 0.0
    %159 = vmatpush1.msra.mxu0 0.0
    %160 = vmatprep.subr.mxu0 0.0
    %161 = vmatpush1.msra.mxu0 0.0
    %162 = vmatprep.subr.mxu0 0.0
    %163 = vmatpush1.msra.mxu0 0.0
    %164 = vmatprep.subr.mxu0 0.0
    %165 = vmatpush1.msra.mxu0 0.0
    %166 = vmatprep.subr.mxu0 0.0
    %167 = vmatpush1.msra.mxu0 0.0
    %168 = vmatprep.subr.mxu0 0.0
    %169 = vmatpush1.msra.mxu0 0.0
    %170 = vmatprep.subr.mxu0 0.0
    %171 = vmatpush1.msra.mxu0 0.0
    %172 = vmatprep.subr.mxu0 0.0
    %173 = vmatpush1.msra.mxu0 0.0
    %174 = vmatprep.subr.mxu0 0.0
    %175 = vmatpush1.msra.mxu0 0.0
    %176 = vmatprep.subr.mxu0 0.0
    %177 = vmatpush1.msra.mxu0 0.0
    %178 = vmatprep.subr.mxu0 0.0
    %179 = vmatpush1.msra.mxu0 0.0
    %180 = vmatprep.mubr.f32.mxu0 0.0
    %181 = vmatmul.mubr.f32.gmra.mrb[0].mxu0 %v114
    %v182 = vpop.f32.mrb[0].mxu0
    %v183 = vadd.f32 %v109, %v182
    %v184 = vpop.f32.mrb[0].mxu0
    %185 = vdwg.mxu0
    %v186 = vadd.f32 %v183, %v37
    %v187 = vmax.f32 %v186, 0.0
    %v189 = vrot.slane %v37, 1
    %vm191 = vcmask 130048
    %v193 = vsel %vm191, %v187, 0
    %195 = vmatprep.subr.mxu0 0.0
    %196 = vmatpush1.msra.mxu0 %v33
    %197 = vmatprep.subr.mxu0 0.0
    %198 = vmatpush1.msra.mxu0 %v34
    %199 = vmatprep.subr.mxu0 0.0
    %200 = vmatpush1.msra.mxu0 0.0
    %201 = vmatprep.subr.mxu0 0.0
    %202 = vmatpush1.msra.mxu0 0.0
    %203 = vmatprep.subr.mxu0 0.0
    %204 = vmatpush1.msra.mxu0 0.0
    %205 = vmatprep.subr.mxu0 0.0
    %206 = vmatpush1.msra.mxu0 0.0
    %207 = vmatprep.subr.mxu0 0.0
    %208 = vmatpush1.msra.mxu0 0.0
    %209 = vmatprep.subr.mxu0 0.0
    %210 = vmatpush1.msra.mxu0 0.0
    %211 = vmatprep.subr.mxu0 0.0
    %212 = vmatpush1.msra.mxu0 0.0
    %213 = vmatprep.subr.mxu0 0.0
    %214 = vmatpush1.msra.mxu0 0.0
    %215 = vmatprep.subr.mxu0 0.0
    %216 = vmatpush1.msra.mxu0 0.0
    %217 = vmatprep.subr.mxu0 0.0
    %218 = vmatpush1.msra.mxu0 0.0
    %219 = vmatprep.subr.mxu0 0.0
    %220 = vmatpush1.msra.mxu0 0.0
    %221 = vmatprep.subr.mxu0 0.0
    %222 = vmatpush1.msra.mxu0 0.0
    %223 = vmatprep.subr.mxu0 0.0
    %224 = vmatpush1.msra.mxu0 0.0
    %225 = vmatprep.subr.mxu0 0.0
    %226 = vmatpush1.msra.mxu0 0.0
    %227 = vmatprep.subr.mxu0 0.0
    %228 = vmatpush1.msra.mxu0 0.0
    %229 = vmatprep.subr.mxu0 0.0
    %230 = vmatpush1.msra.mxu0 0.0
    %231 = vmatprep.subr.mxu0 0.0
    %232 = vmatpush1.msra.mxu0 0.0
    %233 = vmatprep.subr.mxu0 0.0
    %234 = vmatpush1.msra.mxu0 0.0
    %235 = vmatprep.subr.mxu0 0.0
    %236 = vmatpush1.msra.mxu0 0.0
    %237 = vmatprep.subr.mxu0 0.0
    %238 = vmatpush1.msra.mxu0 0.0
    %239 = vmatprep.subr.mxu0 0.0
    %240 = vmatpush1.msra.mxu0 0.0
    %241 = vmatprep.subr.mxu0 0.0
    %242 = vmatpush1.msra.mxu0 0.0
    %243 = vmatprep.subr.mxu0 0.0
    %244 = vmatpush1.msra.mxu0 0.0
    %245 = vmatprep.subr.mxu0 0.0
    %246 = vmatpush1.msra.mxu0 0.0
    %247 = vmatprep.subr.mxu0 0.0
    %248 = vmatpush1.msra.mxu0 0.0
    %249 = vmatprep.subr.mxu0 0.0
    %250 = vmatpush1.msra.mxu0 0.0
    %251 = vmatprep.subr.mxu0 0.0
    %252 = vmatpush1.msra.mxu0 0.0
    %253 = vmatprep.subr.mxu0 0.0
    %254 = vmatpush1.msra.mxu0 0.0
    %255 = vmatprep.subr.mxu0 0.0
    %256 = vmatpush1.msra.mxu0 0.0
    %257 = vmatprep.subr.mxu0 0.0
    %258 = vmatpush1.msra.mxu0 0.0
    %259 = vmatprep.mubr.f32.mxu0 0.0
    %260 = vmatmul.mubr.f32.gmra.mrb[0].mxu0 %v193
    %v261 = vpop.f32.mrb[0].mxu0
    %v262 = vadd.f32 %v189, %v261
    %v263 = vpop.f32.mrb[0].mxu0
    %264 = vdwg.mxu0
    %v265 = vmax.f32 %v262, 0.0
    %v266 = vrot.slane %v37, 2
    %v269 = vsel %vm191, %v265, 0
    %271 = vmatprep.subr.mxu0 0.0
    %272 = vmatpush1.msra.mxu0 %v35
    %273 = vmatprep.subr.mxu0 0.0
    %274 = vmatpush1.msra.mxu0 %v36
    %275 = vmatprep.subr.mxu0 0.0
    %276 = vmatpush1.msra.mxu0 0.0
    %277 = vmatprep.subr.mxu0 0.0
    %278 = vmatpush1.msra.mxu0 0.0
    %279 = vmatprep.subr.mxu0 0.0
    %280 = vmatpush1.msra.mxu0 0.0
    %281 = vmatprep.subr.mxu0 0.0
    %282 = vmatpush1.msra.mxu0 0.0
    %283 = vmatprep.subr.mxu0 0.0
    %284 = vmatpush1.msra.mxu0 0.0
    %285 = vmatprep.subr.mxu0 0.0
    %286 = vmatpush1.msra.mxu0 0.0
    %287 = vmatprep.subr.mxu0 0.0
    %288 = vmatpush1.msra.mxu0 0.0
    %289 = vmatprep.subr.mxu0 0.0
    %290 = vmatpush1.msra.mxu0 0.0
    %291 = vmatprep.subr.mxu0 0.0
    %292 = vmatpush1.msra.mxu0 0.0
    %293 = vmatprep.subr.mxu0 0.0
    %294 = vmatpush1.msra.mxu0 0.0
    %295 = vmatprep.subr.mxu0 0.0
    %296 = vmatpush1.msra.mxu0 0.0
    %297 = vmatprep.subr.mxu0 0.0
    %298 = vmatpush1.msra.mxu0 0.0
    %299 = vmatprep.subr.mxu0 0.0
    %300 = vmatpush1.msra.mxu0 0.0
    %301 = vmatprep.subr.mxu0 0.0
    %302 = vmatpush1.msra.mxu0 0.0
    %303 = vmatprep.subr.mxu0 0.0
    %304 = vmatpush1.msra.mxu0 0.0
    %305 = vmatprep.subr.mxu0 0.0
    %306 = vmatpush1.msra.mxu0 0.0
    %307 = vmatprep.subr.mxu0 0.0
    %308 = vmatpush1.msra.mxu0 0.0
    %309 = vmatprep.subr.mxu0 0.0
    %310 = vmatpush1.msra.mxu0 0.0
    %311 = vmatprep.subr.mxu0 0.0
    %312 = vmatpush1.msra.mxu0 0.0
    %313 = vmatprep.subr.mxu0 0.0
    %314 = vmatpush1.msra.mxu0 0.0
    %315 = vmatprep.subr.mxu0 0.0
    %316 = vmatpush1.msra.mxu0 0.0
    %317 = vmatprep.subr.mxu0 0.0
    %318 = vmatpush1.msra.mxu0 0.0
    %319 = vmatprep.subr.mxu0 0.0
    %320 = vmatpush1.msra.mxu0 0.0
    %321 = vmatprep.subr.mxu0 0.0
    %322 = vmatpush1.msra.mxu0 0.0
    %323 = vmatprep.subr.mxu0 0.0
    %324 = vmatpush1.msra.mxu0 0.0
    %325 = vmatprep.subr.mxu0 0.0
    %326 = vmatpush1.msra.mxu0 0.0
    %327 = vmatprep.subr.mxu0 0.0
    %328 = vmatpush1.msra.mxu0 0.0
    %329 = vmatprep.subr.mxu0 0.0
    %330 = vmatpush1.msra.mxu0 0.0
    %331 = vmatprep.subr.mxu0 0.0
    %332 = vmatpush1.msra.mxu0 0.0
    %333 = vmatprep.subr.mxu0 0.0
    %334 = vmatpush1.msra.mxu0 0.0
    %335 = vmatprep.mubr.f32.mxu0 0.0
    %336 = vmatmul.mubr.f32.gmra.mrb[0].mxu0 %v269
    %v337 = vpop.f32.mrb[0].mxu0
    %v338 = vadd.f32 %v266, %v337
    %v339 = vpop.f32.mrb[0].mxu0
    %340 = vdwg.mxu0
    %vm341 = vcmask 57344
    %342 = vst.msk [vmem:[#allocation2] sm:$0x1] %vm341, %v338
    // Predicated region
    $region14: #{tpu_custom_call.1} parent=1 // pred_check
      _
    $region15: #{tpu_custom_call.1} parent=1 // pred_check_branch
      %344 = sbr.rel (0) target = $region17
    $region16: #{tpu_custom_call.1} parent=1 // pred_region
      %s346 = ssub.s32 16, 16
      %347 = vsyncadd [#allocation3], %s346
      %s349 = sshll.u32 [#allocation2], 4
      %s350 = int_to_ptr.vmem [resolvable:$true] %s349
      %352 = dma.vmem_to_hbm [thread:$0]  %s350, 16, %s3, [#allocation3]
    $region17: #{tpu_custom_call.1} parent=1 // pred_fallthru
      _
    // Predicated region
    $region18: #{tpu_custom_call.1} parent=1 // pred_check
      _
    $region19: #{tpu_custom_call.1} parent=1 // pred_check_branch
      %354 = sbr.rel (0) target = $region21
    $region20: #{tpu_custom_call.1} parent=1 // pred_region
      %355 = dma.done [#allocation3], 16
    $region21: #{tpu_custom_call.1} parent=1 // pred_fallthru
      _
    %356 = vsyncpa [#allocation3], 1

</llo_original>
